<compile_context>
chip_gen: v6e
topology: v6e:2x2x1
jax: 0.10.0
libtpu: 0.0.40
codegen_flags: <defaults>
</compile_context>

<pallas_src>
import functools

import jax
import jax.numpy as jnp
from jax.experimental import pallas as pl
from jax.experimental.pallas import tpu as pltpu

FLAT_DIM = 10
HIDDEN = 128
OUT_DIM = 2
BIAS_ROWS = 8          # bias pack padded to 8 sublanes


def _round_up(x, m):
    return (x + m - 1) // m * m


def net_kernel(x_ref, w1_ref, w2_ref, w3_ref, bias_ref, out_ref):
    # bias pack rows: 0 = b1, 1 = b2, 2 = BN-folded b3 (first OUT_DIM lanes)
    b1 = bias_ref[0:1, :]                       # (1, 128) f32
    b2 = bias_ref[1:2, :]                       # (1, 128) f32
    b3 = bias_ref[2:3, :][:, :OUT_DIM]          # (1, 2)   f32

    # fc1 + ReLU   (dropout eval = identity); bf16 into the MXU, f32 accumulate
    x = x_ref[...].astype(jnp.bfloat16)                                # (TB, 10)
    h1 = jnp.dot(x, w1_ref[...], preferred_element_type=jnp.float32) + b1
    h1 = jnp.maximum(h1, 0.0)                                          # f32 VPU

    # fc2 + ReLU
    h2 = jnp.dot(h1.astype(jnp.bfloat16), w2_ref[...],
                 preferred_element_type=jnp.float32) + b2
    h2 = jnp.maximum(h2, 0.0)

    # batchnorm (eval) folded into fc3; dropout eval = identity
    out_ref[...] = jnp.dot(h2.astype(jnp.bfloat16), w3_ref[...],
                           preferred_element_type=jnp.float32) + b3


def prepare_params(params):
    """One-time parameter folding (run at load time, NOT per forward)."""
    (w1, b1, w2, b2, gamma, beta, running_mean, running_var, v3, g3, b3) = params
    eps = 1e-5

    # BatchNorm1d (eval) -> per-feature scale/shift
    bn_scale = gamma / jnp.sqrt(running_var + eps)          # (128,)
    bn_shift = beta - running_mean * bn_scale               # (128,)

    # weight_norm (PyTorch dim=0): W = g * v / ||v||_row ; v3: (2,128), g3: (2,1)
    row_norm = jnp.sqrt(jnp.sum(v3 * v3, axis=1, keepdims=True))
    w3_eff_t = (g3 * v3 / row_norm).T                       # (128, 2) f32

    # Fold BN affine into fc3: W3' = s[:,None]*W3 ; b3' = t @ W3 + b3  (all f32)
    w3_fold = bn_scale[:, None] * w3_eff_t                  # (128, 2)
    b3_fold = bn_shift @ w3_eff_t + b3                      # (2,)

    # Pack all bias-like vectors into one aligned (8, 128) f32 operand
    bias_pack = (jnp.zeros((BIAS_ROWS, HIDDEN), jnp.float32)
                 .at[0].set(b1)
                 .at[1].set(b2)
                 .at[2, :OUT_DIM].set(b3_fold))

    # Weights go to bf16 (after all folding in f32) so the MXU runs single-pass.
    w1_t = jnp.asarray(w1.T, jnp.bfloat16)                  # (10, 128)
    w2_t = jnp.asarray(w2.T, jnp.bfloat16)                  # (128, 128)
    w3_b = w3_fold.astype(jnp.bfloat16)                     # (128, 2)
    return (w1_t, w2_t, w3_b, bias_pack)


@functools.partial(jax.jit, static_argnames=("batch_tile",))
def net_forward(x, folded, *, batch_tile=4096):
    w1_t, w2_t, w3_b, bias_pack = folded
    B = x.shape[0]

    # Batch tile: multiple of 8 (f32 sublane), capped at batch_tile.
    TB = min(batch_tile, _round_up(B, 8))
    # v7x has 2 TensorCores: make sure the "parallel" batch axis has >= 2 grid
    # steps whenever the batch is large enough to split.
    if B > 8 and pl.cdiv(B, TB) < 2:
        TB = max(8, _round_up(pl.cdiv(B, 2), 8))
    grid = (pl.cdiv(B, TB),)   # partial last block handled by Pallas (no jnp.pad)

    out = pl.pallas_call(
        net_kernel,
        out_shape=jax.ShapeDtypeStruct((B, OUT_DIM), jnp.float32),
        grid=grid,
        in_specs=[
            pl.BlockSpec((TB, FLAT_DIM), lambda i: (i, 0)),        # x tile
            pl.BlockSpec((FLAT_DIM, HIDDEN), lambda i: (0, 0)),    # w1 (resident)
            pl.BlockSpec((HIDDEN, HIDDEN), lambda i: (0, 0)),      # w2 (resident)
            pl.BlockSpec((HIDDEN, OUT_DIM), lambda i: (0, 0)),     # w3 (resident)
            pl.BlockSpec((BIAS_ROWS, HIDDEN), lambda i: (0, 0)),   # bias pack
        ],
        out_specs=pl.BlockSpec((TB, OUT_DIM), lambda i: (i, 0)),
        compiler_params=pltpu.CompilerParams(
            dimension_semantics=("parallel",)),                    # megacore on v7x
    )(x, w1_t, w2_t, w3_b, bias_pack)

    return out


def init_params(key):
    ks = jax.random.split(key, 6)
    w1 = jax.random.normal(ks[0], (HIDDEN, FLAT_DIM), jnp.float32) * 0.1
    b1 = jax.random.normal(ks[1], (HIDDEN,), jnp.float32) * 0.01
    w2 = jax.random.normal(ks[2], (HIDDEN, HIDDEN), jnp.float32) * 0.1
    b2 = jax.random.normal(ks[3], (HIDDEN,), jnp.float32) * 0.01
    gamma = jnp.ones((HIDDEN,), jnp.float32)
    beta = jnp.zeros((HIDDEN,), jnp.float32)
    running_mean = jnp.zeros((HIDDEN,), jnp.float32)
    running_var = jnp.ones((HIDDEN,), jnp.float32)
    v3 = jax.random.normal(ks[4], (OUT_DIM, HIDDEN), jnp.float32) * 0.1
    g3 = jnp.sqrt(jnp.sum(v3 * v3, axis=1, keepdims=True))   # weight_norm init: g = ||v||
    b3 = jax.random.normal(ks[5], (OUT_DIM,), jnp.float32) * 0.01
    return (w1, b1, w2, b2, gamma, beta, running_mean, running_var, v3, g3, b3)


def reference_forward(x, params):
    """Pure-f32 JAX reference matching the PyTorch module in eval mode."""
    (w1, b1, w2, b2, gamma, beta, running_mean, running_var, v3, g3, b3) = params
    eps = 1e-5
    h = jnp.maximum(x @ w1.T + b1, 0.0)
    h = jnp.maximum(h @ w2.T + b2, 0.0)
    h = (h - running_mean) / jnp.sqrt(running_var + eps) * gamma + beta
    w3 = g3 * v3 / jnp.sqrt(jnp.sum(v3 * v3, axis=1, keepdims=True))
    return h @ w3.T + b3


if __name__ == "__main__":
    key = jax.random.PRNGKey(0)
    kx, kp = jax.random.split(key)
    B = 8
    x = jax.random.normal(kx, (B, FLAT_DIM), jnp.float32)
    params = init_params(kp)
    folded = prepare_params(params)          # one-time glue, outside hot path

    out = net_forward(x, folded)
    out = jax.block_until_ready(out)

    ref = reference_forward(x, params)
    assert out.shape == (B, OUT_DIM)
    # Tolerance loosened because the kernel feeds the MXU bf16 inputs
    # (f32 accumulation); the reference is pure f32.
    assert jnp.allclose(out, ref, atol=5e-2, rtol=5e-2), "mismatch vs reference"
    print("KERNEL_OK")
</pallas_src>

<mosaic_0001>
module attributes {stable_mosaic.version = 11 : i64} {
  func.func @net_kernel(%arg0: i32, %arg1: memref<8x10xf32, #tpu.memory_space<vmem>>, %arg2: memref<10x128xbf16, #tpu.memory_space<vmem>>, %arg3: memref<128x128xbf16, #tpu.memory_space<vmem>>, %arg4: memref<128x2xbf16, #tpu.memory_space<vmem>>, %arg5: memref<8x128xf32, #tpu.memory_space<vmem>>, %arg6: memref<8x2xf32, #tpu.memory_space<vmem>>) attributes {dimension_semantics = [#tpu.dimension_semantics<parallel>], iteration_bounds = array<i64: 1>, scalar_prefetch = 0 : i64, scratch_operands = 0 : i64, tpu.core_type = #tpu.core_type<tc>, window_params = [{transform_indices = @transform_0, window_bounds = array<i64: 8, 10>}, {pipeline_mode = #tpu.pipeline_mode<synchronous>, transform_indices = @transform_1, window_bounds = array<i64: 10, 128>}, {pipeline_mode = #tpu.pipeline_mode<synchronous>, transform_indices = @transform_2, window_bounds = array<i64: 128, 128>}, {pipeline_mode = #tpu.pipeline_mode<synchronous>, transform_indices = @transform_3, window_bounds = array<i64: 128, 2>}, {pipeline_mode = #tpu.pipeline_mode<synchronous>, transform_indices = @transform_4, window_bounds = array<i64: 8, 128>}, {transform_indices = @transform_5, window_bounds = array<i64: 8, 2>}]} {
    %c0 = arith.constant 0 : index
    %c0_0 = arith.constant 0 : index
    %0 = vector.load %arg5[%c0, %c0_0] : memref<8x128xf32, #tpu.memory_space<vmem>>, vector<1x128xf32>
    %c1 = arith.constant 1 : index
    %c0_1 = arith.constant 0 : index
    %1 = vector.load %arg5[%c1, %c0_1] : memref<8x128xf32, #tpu.memory_space<vmem>>, vector<1x128xf32>
    %c2 = arith.constant 2 : index
    %c0_2 = arith.constant 0 : index
    %2 = vector.load %arg5[%c2, %c0_2] : memref<8x128xf32, #tpu.memory_space<vmem>>, vector<1x128xf32>
    %3 = vector.extract_strided_slice %2 {offsets = [0, 0], sizes = [1, 2], strides = [1, 1]} : vector<1x128xf32> to vector<1x2xf32>
    %c0_3 = arith.constant 0 : index
    %c0_4 = arith.constant 0 : index
    %4 = vector.load %arg1[%c0_3, %c0_4] : memref<8x10xf32, #tpu.memory_space<vmem>>, vector<8x10xf32>
    %5 = arith.truncf %4 : vector<8x10xf32> to vector<8x10xbf16>
    %c0_5 = arith.constant 0 : index
    %c0_6 = arith.constant 0 : index
    %6 = vector.load %arg2[%c0_5, %c0_6] : memref<10x128xbf16, #tpu.memory_space<vmem>>, vector<10x128xbf16>
    %cst = arith.constant dense<0.000000e+00> : vector<8x128xf32>
    %7 = tpu.matmul %5, %6, %cst {dimension_numbers = #tpu.dot_dimension_numbers<[1], [0], [0], [1], [0, 0, 1, 1], [], []>} : vector<8x10xbf16>, vector<10x128xbf16>, vector<8x128xf32> -> vector<8x128xf32>
    %8 = vector.broadcast %0 : vector<1x128xf32> to vector<8x128xf32>
    %9 = arith.addf %7, %8 : vector<8x128xf32>
    %cst_7 = arith.constant 0.000000e+00 : f32
    %10 = vector.broadcast %cst_7 : f32 to vector<8x128xf32>
    %11 = arith.maximumf %9, %10 : vector<8x128xf32>
    %12 = arith.truncf %11 : vector<8x128xf32> to vector<8x128xbf16>
    %c0_8 = arith.constant 0 : index
    %c0_9 = arith.constant 0 : index
    %13 = vector.load %arg3[%c0_8, %c0_9] : memref<128x128xbf16, #tpu.memory_space<vmem>>, vector<128x128xbf16>
    %cst_10 = arith.constant dense<0.000000e+00> : vector<8x128xf32>
    %14 = tpu.matmul %12, %13, %cst_10 {dimension_numbers = #tpu.dot_dimension_numbers<[1], [0], [0], [1], [0, 0, 1, 1], [], []>} : vector<8x128xbf16>, vector<128x128xbf16>, vector<8x128xf32> -> vector<8x128xf32>
    %15 = vector.broadcast %1 : vector<1x128xf32> to vector<8x128xf32>
    %16 = arith.addf %14, %15 : vector<8x128xf32>
    %cst_11 = arith.constant 0.000000e+00 : f32
    %17 = vector.broadcast %cst_11 : f32 to vector<8x128xf32>
    %18 = arith.maximumf %16, %17 : vector<8x128xf32>
    %19 = arith.truncf %18 : vector<8x128xf32> to vector<8x128xbf16>
    %c0_12 = arith.constant 0 : index
    %c0_13 = arith.constant 0 : index
    %20 = vector.load %arg4[%c0_12, %c0_13] : memref<128x2xbf16, #tpu.memory_space<vmem>>, vector<128x2xbf16>
    %cst_14 = arith.constant dense<0.000000e+00> : vector<8x2xf32>
    %21 = tpu.matmul %19, %20, %cst_14 {dimension_numbers = #tpu.dot_dimension_numbers<[1], [0], [0], [1], [0, 0, 1, 1], [], []>} : vector<8x128xbf16>, vector<128x2xbf16>, vector<8x2xf32> -> vector<8x2xf32>
    %22 = vector.broadcast %3 : vector<1x2xf32> to vector<8x2xf32>
    %23 = arith.addf %21, %22 : vector<8x2xf32>
    %c0_15 = arith.constant 0 : index
    %c0_16 = arith.constant 0 : index
    %24 = vector.load %arg6[%c0_15, %c0_16] : memref<8x2xf32, #tpu.memory_space<vmem>>, vector<8x2xf32>
    tpu.vector_store %arg6[%c0_15, %c0_16], %23 {strides = array<i32>} : memref<8x2xf32, #tpu.memory_space<vmem>>, vector<8x2xf32>,
    return
  }
  func.func @transform_0(%arg0: i32) -> (i32, i32) {
    %c0_i32 = arith.constant 0 : i32
    %c0_i32_0 = arith.constant 0 : i32
    return %arg0, %c0_i32 : i32, i32
  }
  func.func @transform_1(%arg0: i32) -> (i32, i32) {
    %c0_i32 = arith.constant 0 : i32
    %c0_i32_0 = arith.constant 0 : i32
    %c0_i32_1 = arith.constant 0 : i32
    return %c0_i32, %c0_i32_0 : i32, i32
  }
  func.func @transform_2(%arg0: i32) -> (i32, i32) {
    %c0_i32 = arith.constant 0 : i32
    %c0_i32_0 = arith.constant 0 : i32
    %c0_i32_1 = arith.constant 0 : i32
    return %c0_i32, %c0_i32_0 : i32, i32
  }
  func.func @transform_3(%arg0: i32) -> (i32, i32) {
    %c0_i32 = arith.constant 0 : i32
    %c0_i32_0 = arith.constant 0 : i32
    %c0_i32_1 = arith.constant 0 : i32
    return %c0_i32, %c0_i32_0 : i32, i32
  }
  func.func @transform_4(%arg0: i32) -> (i32, i32) {
    %c0_i32 = arith.constant 0 : i32
    %c0_i32_0 = arith.constant 0 : i32
    %c0_i32_1 = arith.constant 0 : i32
    return %c0_i32, %c0_i32_0 : i32, i32
  }
  func.func @transform_5(%arg0: i32) -> (i32, i32) {
    %c0_i32 = arith.constant 0 : i32
    %c0_i32_0 = arith.constant 0 : i32
    return %arg0, %c0_i32 : i32, i32
  }
}

</mosaic_0001>

<llo_original>
// kernel: net_forward.1
$region0: #{net_forward.1}
  #allocation0 [shape = 'u32[]', space=smem, size = 0x4, offset = 0x4, fixed_abs, tag = 'smem constant byte address 0x4 - core index']
  #allocation1 [shape = 'u32[144,128]{1,0:T(1,128)}', space=vmem, size = 0x12000, scoped, tag = 'internal scratch']
  %s0 = inlined_call_operand.hbm [shape: f32[8,10], index: 0, kind: input, shape index: {}]
  %s1 = inlined_call_operand.hbm [shape: bf16[10,128], index: 1, kind: input, shape index: {}]
  %s2 = inlined_call_operand.vmem [shape: bf16[128,128], index: 2, kind: input, shape index: {}]
  %s3 = inlined_call_operand.vmem [shape: bf16[128,2], index: 3, kind: input, shape index: {}]
  %s4 = inlined_call_operand.vmem [shape: f32[8,128], index: 4, kind: input, shape index: {}]
  %s5 = inlined_call_operand.vmem [shape: f32[8,2], index: 5, kind: output, shape index: {}]
  %s6 = sld [smem:[#allocation0]]
  $region38: #{net_forward.1} parent=0
    _
  %s8 = ssub.s32 1, %s6
  %s9 = scalar_select 0, %s8, %s6
  $region1: #{net_forward.1} parent=0
    #allocation2 [shape = 'u8[4096]{0}', space=vmem, size = 0x1000, scoped, tag = 'input window, operand 0, single buffered']
    #allocation3 [shape = 's32[1]{0}', space=sflag, size = 0x4, scoped, tag = 'scoped memory for net_forward.1']
    #allocation4 [shape = 'u8[4096]{0}', space=vmem, size = 0x1000, scoped, tag = 'input window, operand 1, single buffered']
    #allocation5 [shape = 's32[1]{0}', space=sflag, size = 0x4, scoped, tag = 'scoped memory for net_forward.1']
    %10 = vsyncpa [#allocation3], 0
    %11 = vsyncpa [#allocation5], 0
    // Predicated region
    $region2: #{net_forward.1} parent=1 // pred_check
      _
    $region3: #{net_forward.1} parent=1 // pred_check_branch
      %13 = sbr.rel (0) target = $region5
    $region4: #{net_forward.1} parent=1 // pred_region
      %s15 = ssub.s32 128, 128
      %16 = vsyncadd [#allocation3], %s15
      %s18 = sshll.u32 [#allocation2], 4
      %s19 = int_to_ptr.vmem [resolvable:$true] %s18
      %21 = dma.hbm_to_vmem [thread:$0]  %s0, 128, %s19, [#allocation3]
    $region5: #{net_forward.1} parent=1 // pred_fallthru
      _
    // Predicated region
    $region6: #{net_forward.1} parent=1 // pred_check
      _
    $region7: #{net_forward.1} parent=1 // pred_check_branch
      %23 = sbr.rel (0) target = $region9
    $region8: #{net_forward.1} parent=1 // pred_region
      %s25 = ssub.s32 128, 128
      %26 = vsyncadd [#allocation5], %s25
      %s27 = sshll.u32 [#allocation4], 4
      %s28 = int_to_ptr.vmem [resolvable:$true] %s27
      %33 = dma.hbm_to_vmem [thread:$0]  %s1, 128, %s28, [#allocation5], 64, 64, 4
    $region9: #{net_forward.1} parent=1 // pred_fallthru
      _
    // Predicated region
    $region10: #{net_forward.1} parent=1 // pred_check
      _
    $region11: #{net_forward.1} parent=1 // pred_check_branch
      %35 = sbr.rel (0) target = $region13
    $region12: #{net_forward.1} parent=1 // pred_region
      _
    $region13: #{net_forward.1} parent=1 // pred_fallthru
      _
    // Predicated region
    $region14: #{net_forward.1} parent=1 // pred_check
      _
    $region15: #{net_forward.1} parent=1 // pred_check_branch
      %37 = sbr.rel (0) target = $region17
    $region16: #{net_forward.1} parent=1 // pred_region
      _
    $region17: #{net_forward.1} parent=1 // pred_fallthru
      _
    // Predicated region
    $region18: #{net_forward.1} parent=1 // pred_check
      _
    $region19: #{net_forward.1} parent=1 // pred_check_branch
      %39 = sbr.rel (0) target = $region21
    $region20: #{net_forward.1} parent=1 // pred_region
      _
    $region21: #{net_forward.1} parent=1 // pred_fallthru
      _
    // Predicated region
    $region22: #{net_forward.1} parent=1 // pred_check
      _
    $region23: #{net_forward.1} parent=1 // pred_check_branch
      %41 = sbr.rel (0) target = $region25
    $region24: #{net_forward.1} parent=1 // pred_region
      %42 = dma.done [#allocation3], 128
    $region25: #{net_forward.1} parent=1 // pred_fallthru
      _
    // Predicated region
    $region26: #{net_forward.1} parent=1 // pred_check
      _
    $region27: #{net_forward.1} parent=1 // pred_check_branch
      %44 = sbr.rel (0) target = $region29
    $region28: #{net_forward.1} parent=1 // pred_region
      %45 = dma.done [#allocation5], 128
    $region29: #{net_forward.1} parent=1 // pred_fallthru
      _
    %v47 = vld [vmem:[%s4] sm:$0x1]
    %v48 = vld [vmem:[%s4 + $0x1] sm:$0x1]
    %v49 = vld [vmem:[%s4 + $0x2] sm:$0x1]
    %v50 = vld [vmem:[#allocation2] sm:$0xff]
    %v51 = vpack.c.bf16 %v50, %v50
    %v52 = vld [vmem:[#allocation4] sm:$0xf]
    %v53 = vld [vmem:[#allocation4 + $0x4] sm:$0x1]
    %v54 = vlaneseq
    %v55 = vshrl.u32 %v54, 7
    %v56 = vsub.s32 0, %v55
    %v57 = vrot.slane %v47, %v56
    %v60 = vunpack.c.l.b16 %v52
    %v61 = vunpack.c.l.b16 %v53
    %v62 = vpack.c.b16 %v61, %v60
    %vm63 = vcmask 80896
    %v65 = vsel %vm63, %v51, 0
    %vm67 = vcmask 1044480
    %v69 = vsel %vm67, %v62, 0
    %71 = vmatprep.subr.bf16.mxu0 0
    %72 = vmatpush1.bf16.msra.mxu0 0
    %73 = vmatprep.subr.bf16.mxu0 0
    %74 = vmatpush1.bf16.msra.mxu0 0
    %75 = vmatprep.subr.bf16.mxu0 0
    %76 = vmatpush1.bf16.msra.mxu0 0
    %77 = vmatprep.subr.bf16.mxu0 0
    %78 = vmatpush1.bf16.msra.mxu0 0
    %79 = vmatprep.subr.bf16.mxu0 0
    %80 = vmatpush1.bf16.msra.mxu0 0
    %81 = vmatprep.subr.bf16.mxu0 0
    %82 = vmatpush1.bf16.msra.mxu0 0
    %83 = vmatprep.subr.bf16.mxu0 0
    %84 = vmatpush1.bf16.msra.mxu0 0
    %85 = vmatprep.subr.bf16.mxu0 0
    %86 = vmatpush1.bf16.msra.mxu0 %v69
    %87 = vmatprep.subr.bf16.mxu0 0
    %88 = vmatpush2.bf16.msra.mxu0 0
    %89 = vmatprep.subr.bf16.mxu0 0
    %90 = vmatpush2.bf16.msra.mxu0 0
    %91 = vmatprep.subr.bf16.mxu0 0
    %92 = vmatpush2.bf16.msra.mxu0 0
    %93 = vmatprep.subr.bf16.mxu0 0
    %94 = vmatpush2.bf16.msra.mxu0 0
    %95 = vmatprep.subr.bf16.mxu0 0
    %96 = vmatpush2.bf16.msra.mxu0 0
    %97 = vmatprep.subr.bf16.mxu0 0
    %98 = vmatpush2.bf16.msra.mxu0 0
    %99 = vmatprep.subr.bf16.mxu0 0
    %100 = vmatpush2.bf16.msra.mxu0 0
    %101 = vmatprep.subr.bf16.mxu0 0
    %102 = vmatpush2.bf16.msra.mxu0 0
    %103 = vmatprep.mubr.bf16.mxu0 0
    %104 = vmatmul.mubr.bf16.gmra.mxu0 %v65
    %v105 = vpop.f32.mrf.mxu0
    %v106 = vadd.f32 %v57, %v105
    %v107 = vpop.f32.mrf.mxu0
    %v108 = vpop.f32.mrf.mxu0
    %v109 = vpop.f32.mrf.mxu0
    %110 = vdwg.mxu0
    %v111 = vmax.f32 %v106, 0.0
    %v112 = vpack.c.bf16 %v111, %v111
    %v113 = vld [vmem:[%s2] sm:$0xf]
    %v114 = vld [vmem:[%s2 + $0x4] sm:$0xf]
    %v115 = vld [vmem:[%s2 + $0x8] sm:$0xf]
    %v116 = vld [vmem:[%s2 + $0xc] sm:$0xf]
    %v117 = vld [vmem:[%s2 + $0x10] sm:$0xf]
    %v118 = vld [vmem:[%s2 + $0x14] sm:$0xf]
    %v119 = vld [vmem:[%s2 + $0x18] sm:$0xf]
    %v120 = vld [vmem:[%s2 + $0x1c] sm:$0xf]
    %v121 = vld [vmem:[%s2 + $0x20] sm:$0xf]
    %v122 = vld [vmem:[%s2 + $0x24] sm:$0xf]
    %v123 = vld [vmem:[%s2 + $0x28] sm:$0xf]
    %v124 = vld [vmem:[%s2 + $0x2c] sm:$0xf]
    %v125 = vld [vmem:[%s2 + $0x30] sm:$0xf]
    %v126 = vld [vmem:[%s2 + $0x34] sm:$0xf]
    %v127 = vld [vmem:[%s2 + $0x38] sm:$0xf]
    %v128 = vld [vmem:[%s2 + $0x3c] sm:$0xf]
    %v129 = vlaneseq
    %v130 = vshrl.u32 %v129, 7
    %v131 = vsub.s32 0, %v130
    %v132 = vrot.slane %v48, %v131
    %v149 = vunpack.c.l.b16 %v113
    %v150 = vunpack.c.l.b16 %v114
    %v151 = vunpack.c.l.b16 %v115
    %v152 = vunpack.c.l.b16 %v116
    %v153 = vunpack.c.l.b16 %v117
    %v154 = vunpack.c.l.b16 %v118
    %v155 = vunpack.c.l.b16 %v119
    %v156 = vunpack.c.l.b16 %v120
    %v157 = vunpack.c.l.b16 %v121
    %v158 = vunpack.c.l.b16 %v122
    %v159 = vunpack.c.l.b16 %v123
    %v160 = vunpack.c.l.b16 %v124
    %v161 = vunpack.c.l.b16 %v125
    %v162 = vunpack.c.l.b16 %v126
    %v163 = vunpack.c.l.b16 %v127
    %v164 = vunpack.c.l.b16 %v128
    %v165 = vpack.c.b16 %v150, %v149
    %v166 = vpack.c.b16 %v152, %v151
    %v167 = vpack.c.b16 %v154, %v153
    %v168 = vpack.c.b16 %v156, %v155
    %v169 = vpack.c.b16 %v158, %v157
    %v170 = vpack.c.b16 %v160, %v159
    %v171 = vpack.c.b16 %v162, %v161
    %v172 = vpack.c.b16 %v164, %v163
    %181 = vmatprep.subr.bf16.mxu0 0
    %182 = vmatpush1.bf16.msra.mxu0 %v172
    %183 = vmatprep.subr.bf16.mxu0 0
    %184 = vmatpush1.bf16.msra.mxu0 %v171
    %185 = vmatprep.subr.bf16.mxu0 0
    %186 = vmatpush1.bf16.msra.mxu0 %v170
    %187 = vmatprep.subr.bf16.mxu0 0
    %188 = vmatpush1.bf16.msra.mxu0 %v169
    %189 = vmatprep.subr.bf16.mxu0 0
    %190 = vmatpush1.bf16.msra.mxu0 %v168
    %191 = vmatprep.subr.bf16.mxu0 0
    %192 = vmatpush1.bf16.msra.mxu0 %v167
    %193 = vmatprep.subr.bf16.mxu0 0
    %194 = vmatpush1.bf16.msra.mxu0 %v166
    %195 = vmatprep.subr.bf16.mxu0 0
    %196 = vmatpush1.bf16.msra.mxu0 %v165
    %197 = vmatprep.subr.bf16.mxu0 0
    %198 = vmatpush2.bf16.msra.mxu0 0
    %199 = vmatprep.subr.bf16.mxu0 0
    %200 = vmatpush2.bf16.msra.mxu0 0
    %201 = vmatprep.subr.bf16.mxu0 0
    %202 = vmatpush2.bf16.msra.mxu0 0
    %203 = vmatprep.subr.bf16.mxu0 0
    %204 = vmatpush2.bf16.msra.mxu0 0
    %205 = vmatprep.subr.bf16.mxu0 0
    %206 = vmatpush2.bf16.msra.mxu0 0
    %207 = vmatprep.subr.bf16.mxu0 0
    %208 = vmatpush2.bf16.msra.mxu0 0
    %209 = vmatprep.subr.bf16.mxu0 0
    %210 = vmatpush2.bf16.msra.mxu0 0
    %211 = vmatprep.subr.bf16.mxu0 0
    %212 = vmatpush2.bf16.msra.mxu0 0
    %213 = vmatprep.mubr.bf16.mxu0 0
    %214 = vmatmul.mubr.bf16.gmra.mxu0 %v112
    %v215 = vpop.f32.mrf.mxu0
    %v216 = vadd.f32 %v132, %v215
    %v217 = vpop.f32.mrf.mxu0
    %v218 = vpop.f32.mrf.mxu0
    %v219 = vpop.f32.mrf.mxu0
    %220 = vdwg.mxu0
    %v221 = vmax.f32 %v216, 0.0
    %v222 = vpack.c.bf16 %v221, %v221
    %v223 = vld [vmem:[%s3] sm:$0xf]
    %v224 = vld [vmem:[%s3 + $0x4] sm:$0xf]
    %v225 = vld [vmem:[%s3 + $0x8] sm:$0xf]
    %v226 = vld [vmem:[%s3 + $0xc] sm:$0xf]
    %v227 = vld [vmem:[%s3 + $0x10] sm:$0xf]
    %v228 = vld [vmem:[%s3 + $0x14] sm:$0xf]
    %v229 = vld [vmem:[%s3 + $0x18] sm:$0xf]
    %v230 = vld [vmem:[%s3 + $0x1c] sm:$0xf]
    %v231 = vld [vmem:[%s3 + $0x20] sm:$0xf]
    %v232 = vld [vmem:[%s3 + $0x24] sm:$0xf]
    %v233 = vld [vmem:[%s3 + $0x28] sm:$0xf]
    %v234 = vld [vmem:[%s3 + $0x2c] sm:$0xf]
    %v235 = vld [vmem:[%s3 + $0x30] sm:$0xf]
    %v236 = vld [vmem:[%s3 + $0x34] sm:$0xf]
    %v237 = vld [vmem:[%s3 + $0x38] sm:$0xf]
    %v238 = vld [vmem:[%s3 + $0x3c] sm:$0xf]
    %v239 = vlaneseq
    %v240 = vshrl.u32 %v239, 7
    %v241 = vsub.s32 0, %v240
    %v242 = vrot.slane %v49, %v241
    %v259 = vunpack.c.l.b16 %v223
    %v260 = vunpack.c.l.b16 %v224
    %v261 = vunpack.c.l.b16 %v225
    %v262 = vunpack.c.l.b16 %v226
    %v263 = vunpack.c.l.b16 %v227
    %v264 = vunpack.c.l.b16 %v228
    %v265 = vunpack.c.l.b16 %v229
    %v266 = vunpack.c.l.b16 %v230
    %v267 = vunpack.c.l.b16 %v231
    %v268 = vunpack.c.l.b16 %v232
    %v269 = vunpack.c.l.b16 %v233
    %v270 = vunpack.c.l.b16 %v234
    %v271 = vunpack.c.l.b16 %v235
    %v272 = vunpack.c.l.b16 %v236
    %v273 = vunpack.c.l.b16 %v237
    %v274 = vunpack.c.l.b16 %v238
    %v275 = vpack.c.b16 %v260, %v259
    %v276 = vpack.c.b16 %v262, %v261
    %v277 = vpack.c.b16 %v264, %v263
    %v278 = vpack.c.b16 %v266, %v265
    %v279 = vpack.c.b16 %v268, %v267
    %v280 = vpack.c.b16 %v270, %v269
    %v281 = vpack.c.b16 %v272, %v271
    %v282 = vpack.c.b16 %v274, %v273
    %291 = vmatprep.subr.bf16.mxu0 0
    %292 = vmatpush1.bf16.msra.mxu0 %v282
    %293 = vmatprep.subr.bf16.mxu0 0
    %294 = vmatpush1.bf16.msra.mxu0 %v281
    %295 = vmatprep.subr.bf16.mxu0 0
    %296 = vmatpush1.bf16.msra.mxu0 %v280
    %297 = vmatprep.subr.bf16.mxu0 0
    %298 = vmatpush1.bf16.msra.mxu0 %v279
    %299 = vmatprep.subr.bf16.mxu0 0
    %300 = vmatpush1.bf16.msra.mxu0 %v278
    %301 = vmatprep.subr.bf16.mxu0 0
    %302 = vmatpush1.bf16.msra.mxu0 %v277
    %303 = vmatprep.subr.bf16.mxu0 0
    %304 = vmatpush1.bf16.msra.mxu0 %v276
    %305 = vmatprep.subr.bf16.mxu0 0
    %306 = vmatpush1.bf16.msra.mxu0 %v275
    %307 = vmatprep.subr.bf16.mxu0 0
    %308 = vmatpush2.bf16.msra.mxu0 0
    %309 = vmatprep.subr.bf16.mxu0 0
    %310 = vmatpush2.bf16.msra.mxu0 0
    %311 = vmatprep.subr.bf16.mxu0 0
    %312 = vmatpush2.bf16.msra.mxu0 0
    %313 = vmatprep.subr.bf16.mxu0 0
    %314 = vmatpush2.bf16.msra.mxu0 0
    %315 = vmatprep.subr.bf16.mxu0 0
    %316 = vmatpush2.bf16.msra.mxu0 0
    %317 = vmatprep.subr.bf16.mxu0 0
    %318 = vmatpush2.bf16.msra.mxu0 0
    %319 = vmatprep.subr.bf16.mxu0 0
    %320 = vmatpush2.bf16.msra.mxu0 0
    %321 = vmatprep.subr.bf16.mxu0 0
    %322 = vmatpush2.bf16.msra.mxu0 0
    %323 = vmatprep.mubr.bf16.mxu0 0
    %324 = vmatmul.mubr.bf16.gmra.mxu0 %v222
    %v325 = vpop.f32.mrf.mxu0
    %v326 = vadd.f32 %v242, %v325
    %v327 = vpop.f32.mrf.mxu0
    %v328 = vpop.f32.mrf.mxu0
    %v329 = vpop.f32.mrf.mxu0
    %330 = vdwg.mxu0
    %vm331 = vcmask 15360
    %332 = vst.msk [vmem:[%s5] sm:$0xff] %vm331, %v326
    // Predicated region
    $region30: #{net_forward.1} parent=1 // pred_check
      _
    $region31: #{net_forward.1} parent=1 // pred_check_branch
      %334 = sbr.rel (0) target = $region33
    $region32: #{net_forward.1} parent=1 // pred_region
      _
    $region33: #{net_forward.1} parent=1 // pred_fallthru
      _
    // Predicated region
    $region34: #{net_forward.1} parent=1 // pred_check
      _
    $region35: #{net_forward.1} parent=1 // pred_check_branch
      %336 = sbr.rel (0) target = $region37
    $region36: #{net_forward.1} parent=1 // pred_region
      _
    $region37: #{net_forward.1} parent=1 // pred_fallthru
      _
    %337 = vsyncpa [#allocation3], 1
    %338 = vsyncpa [#allocation5], 1

</llo_original>
